<compile_context>
chip_gen: v7x
topology: tpu7x:2x2x1
jax: 0.10.0
libtpu: 0.0.40
codegen_flags: <defaults>
</compile_context>

<pallas_src>
import functools
import math

import jax
import jax.numpy as jnp
from jax import lax
from jax.experimental import pallas as pl
from jax.experimental.pallas import tpu as pltpu


def _round_up(x, m):
    return -(-x // m) * m


def _controller_kernel(x_ref, u_ref, w1u_ref, w1x_ref, b1_ref, w2_ref, b2_ref,
                       o_ref, acc_ref, *, nc, g):
    # x_ref  : (block_nb, gC, block_hw) native dtype -- streamed feature-map tile
    # u_ref  : (block_nb, g)   f32                   -- control scalars (g per sublane group)
    # w1u    : (g, g*hidden)   block-diag u rows of the control Linear weight
    # w1x    : (gC, g*hidden)  block-diag pooled-feature rows, pre-scaled by 1/(H*W)
    # b1     : (1, g*hidden)
    # w2     : (g*hidden, g*n_out) block-diag
    # b2     : (1, g*n_out)
    # o_ref  : (block_nb, g*n_out) f32
    # acc_ref: (block_nb, gC, 128) f32 scratch      -- lane-parallel running spatial sum
    k = pl.program_id(1)

    @pl.when(k == 0)
    def _init():
        acc_ref[...] = jnp.zeros_like(acc_ref)

    # Steady state: pure VPU adds, one 128-lane column slab at a time.  The bf16/f32 cast
    # is fused per slab, so no tile-sized f32 temporary and no per-step XLU reduce.
    def _acc_col(i, carry):
        col = pl.multiple_of(i * 128, 128)
        acc_ref[...] += x_ref[:, :, pl.ds(col, 128)].astype(jnp.float32)
        return carry

    lax.fori_loop(0, nc, _acc_col, 0, unroll=(nc <= 8))

    @pl.when(k == pl.num_programs(1) - 1)
    def _epilogue():
        # Single 128->1 cross-lane reduce per batch tile (XLU, off the hot path).
        pooled = jnp.sum(acc_ref[...], axis=-1)          # (block_nb, gC); mean folded into w1x
        u = u_ref[...]                                   # (block_nb, g)
        # control(x): Linear on cat([u, pooled], 1); concat folded into two terms.
        if g == 1:
            hu = u * w1u_ref[...]                        # VPU broadcast, not a K=1 MXU pass
        else:
            hu = jnp.dot(u, w1u_ref[...], preferred_element_type=jnp.float32)
        h = hu + jnp.dot(pooled, w1x_ref[...], preferred_element_type=jnp.float32)
        h = jnp.maximum(h + b1_ref[...], 0.0)            # ReLU
        # output(x): Linear + Sigmoid
        y = jnp.dot(h, w2_ref[...], preferred_element_type=jnp.float32) + b2_ref[...]
        o_ref[...] = jax.nn.sigmoid(y).astype(o_ref.dtype)


def _vmem_plan():
    """Per-generation x-tile byte budget (per buffer) and scoped-VMEM limit."""
    budget, vmem_limit = 6 << 20, 44 << 20            # safe default (covers v7x: 64 MiB physical)
    try:
        cap = getattr(pltpu.get_tpu_info(), "vmem_capacity_bytes", None)
        if cap is not None and cap > (80 << 20):      # v5e / v6e class: 128 MiB physical VMEM
            budget, vmem_limit = 8 << 20, 64 << 20
    except Exception:
        pass
    return budget, vmem_limit


def _plan_grouping(B, C):
    """Fold g batch rows into the sublane axis so gC % 8 == 0 (no vreg/VMEM padding)."""
    g = 8 // math.gcd(C, 8)
    g = math.gcd(g, B)                                # graceful fallback if B can't be grouped

    def _parallel_steps(gg):
        nb = B // gg
        return nb // 8 if (nb % 8 == 0 and nb >= 16) else 1

    # Prefer megacore parallelism (>=2 batch tiles on v7x) over sublane packing.
    if g > 1 and _parallel_steps(g) < 2 and _parallel_steps(1) >= 2:
        g = 1
    return g


def independent_controller_forward(x_nchw, u, w1, b1, w2, b2,
                                   *, block_nb=None, block_hw=None):
    """Fused IndependentController forward.

    x_nchw: (B, C, H, W) feature map (f32 or bf16); u: (B,) control scalar.
    w1: (C+1, hidden) control Linear weight (in_dim x out_dim; row 0 is the u column).
    b1: (hidden,);  w2: (hidden, n_out);  b2: (n_out,).
    """
    B, C, H, W = x_nchw.shape
    HW = H * W
    hidden = w1.shape[1]
    n_out = w2.shape[1]
    itemsize = jnp.dtype(x_nchw.dtype).itemsize

    # --- Sublane grouping (g batch rows share the channel/sublane axis).
    g = _plan_grouping(B, C)
    nb_total = B // g
    gC = g * C

    # --- Batch-group tile: output block's second-minor must be a multiple of 8 or full.
    if block_nb is None:
        block_nb = 8 if (nb_total % 8 == 0 and nb_total >= 16) else nb_total
    assert nb_total % block_nb == 0 and (block_nb % 8 == 0 or block_nb == nb_total)

    # --- Spatial tile: per-generation byte budget; pad HW with zeros (exact for the sum).
    budget, vmem_limit = _vmem_plan()
    rows_padded = _round_up(gC, 8)
    if block_hw is None:
        bytes_per_lane = max(1, block_nb * rows_padded * itemsize)
        cap = max(128, (budget // bytes_per_lane) // 128 * 128)
        block_hw = min(_round_up(HW, 128), cap)
    assert block_hw % 128 == 0
    HWp = _round_up(HW, block_hw)

    x3 = x_nchw.reshape(nb_total, gC, HW)               # free row-major regroup
    if HWp != HW:
        x3 = jnp.pad(x3, ((0, 0), (0, 0), (0, HWp - HW)))
    u_g = u.reshape(nb_total, g).astype(jnp.float32)

    # --- Fold the concat and the 1/(H*W) mean into the weights; block-diagonal (kron)
    #     copies make the grouped layout a set of plain matmuls (exact; g==1 is identity).
    w1f = w1.astype(jnp.float32)
    w1u = w1f[0:1, :]                                   # (1, hidden): u row
    w1x = w1f[1:, :] * jnp.float32(1.0 / HW)            # (C, hidden): true-HW mean folded in
    eye = jnp.eye(g, dtype=jnp.float32)
    w1u_k = jnp.kron(eye, w1u)                          # (g, g*hidden)
    w1x_k = jnp.kron(eye, w1x)                          # (gC, g*hidden)
    w2_k = jnp.kron(eye, w2.astype(jnp.float32))        # (g*hidden, g*n_out)
    b1_k = jnp.tile(b1.reshape(1, hidden).astype(jnp.float32), (1, g))
    b2_k = jnp.tile(b2.reshape(1, n_out).astype(jnp.float32), (1, g))

    grid = (nb_total // block_nb, HWp // block_hw)
    nc = block_hw // 128
    kernel = functools.partial(_controller_kernel, nc=nc, g=g)

    # Advisory cost: this kernel is HBM-bandwidth bound on x.
    bytes_accessed = int(B * C * HWp * itemsize
                         + 4 * (u_g.size + w1u_k.size + w1x_k.size + b1_k.size
                                + w2_k.size + b2_k.size + B * n_out))
    flops = int(2 * B * C * HW + 2 * B * (C * hidden + hidden * n_out))
    cost = pl.CostEstimate(flops=flops, transcendentals=int(B * n_out),
                           bytes_accessed=bytes_accessed)

    out = pl.pallas_call(
        kernel,
        out_shape=jax.ShapeDtypeStruct((nb_total, g * n_out), jnp.float32),
        grid=grid,
        in_specs=[
            pl.BlockSpec((block_nb, gC, block_hw), lambda b, k: (b, 0, k)),  # x (streamed)
            pl.BlockSpec((block_nb, g), lambda b, k: (b, 0)),                # u
            # Grid-constant, VMEM-resident parameters (tiny at these sizes).
            pl.BlockSpec((g, g * hidden), lambda b, k: (0, 0)),              # w1u (block-diag)
            pl.BlockSpec((gC, g * hidden), lambda b, k: (0, 0)),             # w1x (block-diag)
            pl.BlockSpec((1, g * hidden), lambda b, k: (0, 0)),              # b1
            pl.BlockSpec((g * hidden, g * n_out), lambda b, k: (0, 0)),      # w2 (block-diag)
            pl.BlockSpec((1, g * n_out), lambda b, k: (0, 0)),               # b2
        ],
        out_specs=pl.BlockSpec((block_nb, g * n_out), lambda b, k: (b, 0)),
        scratch_shapes=[pltpu.VMEM((block_nb, gC, 128), jnp.float32)],       # lane-parallel acc
        compiler_params=pltpu.CompilerParams(
            dimension_semantics=("parallel", "arbitrary"),   # batch across TCs, HW reduction last
            vmem_limit_bytes=vmem_limit,
        ),
        cost_estimate=cost,
    )(x3, u_g, w1u_k, w1x_k, b1_k, w2_k, b2_k)

    return out.reshape(B, n_out)                         # ungroup (free XLA reshape)


def _reference(x_nchw, u, w1, b1, w2, b2):
    """Pure-JAX reference mirroring the PyTorch forward."""
    B = x_nchw.shape[0]
    pooled = jnp.mean(x_nchw.astype(jnp.float32), axis=(2, 3))        # input(x): GlobalAvgPool2d
    cat = jnp.concatenate([u.reshape(B, 1), pooled], axis=1)          # cat([u.unsqueeze(-1), x], 1)
    h = jnp.maximum(cat @ w1 + b1, 0.0)                               # control(x)
    return jax.nn.sigmoid(h @ w2 + b2)                                # output(x)


if __name__ == "__main__":
    key = jax.random.PRNGKey(0)
    kx, ku, k1, k2, k3, k4 = jax.random.split(key, 6)

    B, C, H, W = 2, 4, 16, 16
    hidden, n_out = 32, 8

    x = jax.random.normal(kx, (B, C, H, W), dtype=jnp.float32)
    u = jax.random.uniform(ku, (B,), dtype=jnp.float32)

    # Deterministic synthetic parameters (Linear weights stored as in_dim x out_dim).
    w1 = jax.random.normal(k1, (C + 1, hidden), dtype=jnp.float32) * 0.1
    b1 = jax.random.normal(k2, (hidden,), dtype=jnp.float32) * 0.1
    w2 = jax.random.normal(k3, (hidden, n_out), dtype=jnp.float32) * 0.1
    b2 = jax.random.normal(k4, (n_out,), dtype=jnp.float32) * 0.1

    ref = _reference(x, u, w1, b1, w2, b2)

    # 1) Auto-tiled path (single spatial block at these toy shapes).
    out = jax.block_until_ready(independent_controller_forward(x, u, w1, b1, w2, b2))
    assert out.shape == (B, n_out)
    assert jnp.allclose(out, ref, atol=1e-5, rtol=1e-5), "auto-tile mismatch vs reference"

    # 2) Force a 2-step spatial reduction to exercise the accumulator + pl.when epilogue.
    out_tiled = jax.block_until_ready(
        independent_controller_forward(x, u, w1, b1, w2, b2, block_hw=128))
    assert jnp.allclose(out_tiled, ref, atol=1e-5, rtol=1e-5), "tiled mismatch vs reference"

    # 3) Stream x in bf16 (halves HBM bytes); f32 accumulation keeps numerics close to f32 ref.
    out_bf16 = jax.block_until_ready(
        independent_controller_forward(x.astype(jnp.bfloat16), u, w1, b1, w2, b2, block_hw=128))
    assert jnp.allclose(out_bf16, ref, atol=1e-2, rtol=1e-2), "bf16 stream mismatch vs reference"

    print("KERNEL_OK")
</pallas_src>

<mosaic_0001>
module attributes {stable_mosaic.version = 11 : i64} {
  func.func @_controller_kernel(%arg0: i32, %arg1: i32, %arg2: memref<1x8x256xf32, #tpu.memory_space<vmem>>, %arg3: memref<1x2xf32, #tpu.memory_space<vmem>>, %arg4: memref<2x64xf32, #tpu.memory_space<vmem>>, %arg5: memref<8x64xf32, #tpu.memory_space<vmem>>, %arg6: memref<1x64xf32, #tpu.memory_space<vmem>>, %arg7: memref<64x16xf32, #tpu.memory_space<vmem>>, %arg8: memref<1x16xf32, #tpu.memory_space<vmem>>, %arg9: memref<1x16xf32, #tpu.memory_space<vmem>>, %arg10: memref<1x8x128xf32, #tpu.memory_space<vmem>>) attributes {dimension_semantics = [#tpu.dimension_semantics<parallel>, #tpu.dimension_semantics<arbitrary>], iteration_bounds = array<i64: 1, 1>, scalar_prefetch = 0 : i64, scratch_operands = 1 : i64, tpu.core_type = #tpu.core_type<tc>, window_params = [{transform_indices = @transform_0, window_bounds = array<i64: 1, 8, 256>}, {transform_indices = @transform_1, window_bounds = array<i64: 1, 2>}, {pipeline_mode = #tpu.pipeline_mode<synchronous>, transform_indices = @transform_2, window_bounds = array<i64: 2, 64>}, {pipeline_mode = #tpu.pipeline_mode<synchronous>, transform_indices = @transform_3, window_bounds = array<i64: 8, 64>}, {pipeline_mode = #tpu.pipeline_mode<synchronous>, transform_indices = @transform_4, window_bounds = array<i64: 1, 64>}, {pipeline_mode = #tpu.pipeline_mode<synchronous>, transform_indices = @transform_5, window_bounds = array<i64: 64, 16>}, {pipeline_mode = #tpu.pipeline_mode<synchronous>, transform_indices = @transform_6, window_bounds = array<i64: 1, 16>}, {transform_indices = @transform_7, window_bounds = array<i64: 1, 16>}]} {
    %c0_i32 = arith.constant 0 : i32
    %0 = arith.cmpi eq, %arg1, %c0_i32 : i32
    %1 = arith.extui %0 : i1 to i32
    %c0_i32_0 = arith.constant 0 : i32
    %2 = arith.cmpi ne, %1, %c0_i32_0 : i32
    scf.if %2 {
      %cst = arith.constant 0.000000e+00 : f32
      %20 = vector.broadcast %cst : f32 to vector<1x8x128xf32>
      %c0_20 = arith.constant 0 : index
      %c0_21 = arith.constant 0 : index
      %c0_22 = arith.constant 0 : index
      %21 = vector.load %arg10[%c0_20, %c0_21, %c0_22] : memref<1x8x128xf32, #tpu.memory_space<vmem>>, vector<1x8x128xf32>
      tpu.vector_store %arg10[%c0_20, %c0_21, %c0_22], %20 {strides = array<i32>} : memref<1x8x128xf32, #tpu.memory_space<vmem>>, vector<1x8x128xf32>,
    } else {
    }
    %c0_i32_1 = arith.constant 0 : i32
    %c128_i32 = arith.constant 128 : i32
    %3 = arith.muli %c0_i32_1, %c128_i32 : i32
    %4 = tpu.assume_multiple %3, 128 : i32
    %c0 = arith.constant 0 : index
    %c0_2 = arith.constant 0 : index
    %c0_3 = arith.constant 0 : index
    %5 = vector.load %arg10[%c0, %c0_2, %c0_3] : memref<1x8x128xf32, #tpu.memory_space<vmem>>, vector<1x8x128xf32>
    %c0_4 = arith.constant 0 : index
    %c0_5 = arith.constant 0 : index
    %6 = arith.index_cast %4 : i32 to index
    %7 = vector.load %arg2[%c0_4, %c0_5, %6] : memref<1x8x256xf32, #tpu.memory_space<vmem>>, vector<1x8x128xf32>
    %8 = arith.addf %5, %7 : vector<1x8x128xf32>
    %c0_6 = arith.constant 0 : index
    %c0_7 = arith.constant 0 : index
    %c0_8 = arith.constant 0 : index
    %9 = vector.load %arg10[%c0_6, %c0_7, %c0_8] : memref<1x8x128xf32, #tpu.memory_space<vmem>>, vector<1x8x128xf32>
    tpu.vector_store %arg10[%c0_6, %c0_7, %c0_8], %8 {strides = array<i32>} : memref<1x8x128xf32, #tpu.memory_space<vmem>>, vector<1x8x128xf32>,
    %c1_i32 = arith.constant 1 : i32
    %c128_i32_9 = arith.constant 128 : i32
    %10 = arith.muli %c1_i32, %c128_i32_9 : i32
    %11 = tpu.assume_multiple %10, 128 : i32
    %c0_10 = arith.constant 0 : index
    %c0_11 = arith.constant 0 : index
    %c0_12 = arith.constant 0 : index
    %12 = vector.load %arg10[%c0_10, %c0_11, %c0_12] : memref<1x8x128xf32, #tpu.memory_space<vmem>>, vector<1x8x128xf32>
    %c0_13 = arith.constant 0 : index
    %c0_14 = arith.constant 0 : index
    %13 = arith.index_cast %11 : i32 to index
    %14 = vector.load %arg2[%c0_13, %c0_14, %13] : memref<1x8x256xf32, #tpu.memory_space<vmem>>, vector<1x8x128xf32>
    %15 = arith.addf %12, %14 : vector<1x8x128xf32>
    %c0_15 = arith.constant 0 : index
    %c0_16 = arith.constant 0 : index
    %c0_17 = arith.constant 0 : index
    %16 = vector.load %arg10[%c0_15, %c0_16, %c0_17] : memref<1x8x128xf32, #tpu.memory_space<vmem>>, vector<1x8x128xf32>
    tpu.vector_store %arg10[%c0_15, %c0_16, %c0_17], %15 {strides = array<i32>} : memref<1x8x128xf32, #tpu.memory_space<vmem>>, vector<1x8x128xf32>,
    %c2_i32 = arith.constant 2 : i32
    %c0_i32_18 = arith.constant 0 : i32
    %17 = arith.cmpi eq, %arg1, %c0_i32_18 : i32
    %18 = arith.extui %17 : i1 to i32
    %c0_i32_19 = arith.constant 0 : i32
    %19 = arith.cmpi ne, %18, %c0_i32_19 : i32
    scf.if %19 {
      %c0_20 = arith.constant 0 : index
      %c0_21 = arith.constant 0 : index
      %c0_22 = arith.constant 0 : index
      %20 = vector.load %arg10[%c0_20, %c0_21, %c0_22] : memref<1x8x128xf32, #tpu.memory_space<vmem>>, vector<1x8x128xf32>
      %cst = arith.constant dense<0.000000e+00> : vector<1x8xf32>
      %21 = vector.multi_reduction <add>, %20, %cst [2] : vector<1x8x128xf32> to vector<1x8xf32>
      %c0_23 = arith.constant 0 : index
      %c0_24 = arith.constant 0 : index
      %22 = vector.load %arg3[%c0_23, %c0_24] : memref<1x2xf32, #tpu.memory_space<vmem>>, vector<1x2xf32>
      %c0_25 = arith.constant 0 : index
      %c0_26 = arith.constant 0 : index
      %23 = vector.load %arg4[%c0_25, %c0_26] : memref<2x64xf32, #tpu.memory_space<vmem>>, vector<2x64xf32>
      %cst_27 = arith.constant dense<0.000000e+00> : vector<1x64xf32>
      %24 = tpu.matmul %22, %23, %cst_27 {dimension_numbers = #tpu.dot_dimension_numbers<[1], [0], [0], [1], [0, 0, 1, 1], [], []>} : vector<1x2xf32>, vector<2x64xf32>, vector<1x64xf32> -> vector<1x64xf32>
      %c0_28 = arith.constant 0 : index
      %c0_29 = arith.constant 0 : index
      %25 = vector.load %arg5[%c0_28, %c0_29] : memref<8x64xf32, #tpu.memory_space<vmem>>, vector<8x64xf32>
      %cst_30 = arith.constant dense<0.000000e+00> : vector<1x64xf32>
      %26 = tpu.matmul %21, %25, %cst_30 {dimension_numbers = #tpu.dot_dimension_numbers<[1], [0], [0], [1], [0, 0, 1, 1], [], []>} : vector<1x8xf32>, vector<8x64xf32>, vector<1x64xf32> -> vector<1x64xf32>
      %27 = arith.addf %24, %26 : vector<1x64xf32>
      %c0_31 = arith.constant 0 : index
      %c0_32 = arith.constant 0 : index
      %28 = vector.load %arg6[%c0_31, %c0_32] : memref<1x64xf32, #tpu.memory_space<vmem>>, vector<1x64xf32>
      %29 = arith.addf %27, %28 : vector<1x64xf32>
      %cst_33 = arith.constant 0.000000e+00 : f32
      %30 = vector.broadcast %cst_33 : f32 to vector<1x64xf32>
      %31 = arith.maximumf %29, %30 : vector<1x64xf32>
      %c0_34 = arith.constant 0 : index
      %c0_35 = arith.constant 0 : index
      %32 = vector.load %arg7[%c0_34, %c0_35] : memref<64x16xf32, #tpu.memory_space<vmem>>, vector<64x16xf32>
      %cst_36 = arith.constant dense<0.000000e+00> : vector<1x16xf32>
      %33 = tpu.matmul %31, %32, %cst_36 {dimension_numbers = #tpu.dot_dimension_numbers<[1], [0], [0], [1], [0, 0, 1, 1], [], []>} : vector<1x64xf32>, vector<64x16xf32>, vector<1x16xf32> -> vector<1x16xf32>
      %c0_37 = arith.constant 0 : index
      %c0_38 = arith.constant 0 : index
      %34 = vector.load %arg8[%c0_37, %c0_38] : memref<1x16xf32, #tpu.memory_space<vmem>>, vector<1x16xf32>
      %35 = arith.addf %33, %34 : vector<1x16xf32>
      %36 = arith.negf %35 : vector<1x16xf32>
      %37 = math.exp %36 : vector<1x16xf32>
      %cst_39 = arith.constant 1.000000e+00 : f32
      %38 = vector.broadcast %cst_39 : f32 to vector<1x16xf32>
      %39 = arith.addf %38, %37 : vector<1x16xf32>
      %40 = arith.divf %38, %39 : vector<1x16xf32>
      %c0_40 = arith.constant 0 : index
      %c0_41 = arith.constant 0 : index
      %41 = vector.load %arg9[%c0_40, %c0_41] : memref<1x16xf32, #tpu.memory_space<vmem>>, vector<1x16xf32>
      tpu.vector_store %arg9[%c0_40, %c0_41], %40 {strides = array<i32>} : memref<1x16xf32, #tpu.memory_space<vmem>>, vector<1x16xf32>,
    } else {
    }
    return
  }
  func.func @transform_0(%arg0: i32, %arg1: i32) -> (i32, i32, i32) {
    %c0_i32 = arith.constant 0 : i32
    %c0_i32_0 = arith.constant 0 : i32
    return %arg0, %c0_i32, %arg1 : i32, i32, i32
  }
  func.func @transform_1(%arg0: i32, %arg1: i32) -> (i32, i32) {
    %c0_i32 = arith.constant 0 : i32
    %c0_i32_0 = arith.constant 0 : i32
    return %arg0, %c0_i32 : i32, i32
  }
  func.func @transform_2(%arg0: i32, %arg1: i32) -> (i32, i32) {
    %c0_i32 = arith.constant 0 : i32
    %c0_i32_0 = arith.constant 0 : i32
    %c0_i32_1 = arith.constant 0 : i32
    return %c0_i32, %c0_i32_0 : i32, i32
  }
  func.func @transform_3(%arg0: i32, %arg1: i32) -> (i32, i32) {
    %c0_i32 = arith.constant 0 : i32
    %c0_i32_0 = arith.constant 0 : i32
    %c0_i32_1 = arith.constant 0 : i32
    return %c0_i32, %c0_i32_0 : i32, i32
  }
  func.func @transform_4(%arg0: i32, %arg1: i32) -> (i32, i32) {
    %c0_i32 = arith.constant 0 : i32
    %c0_i32_0 = arith.constant 0 : i32
    %c0_i32_1 = arith.constant 0 : i32
    return %c0_i32, %c0_i32_0 : i32, i32
  }
  func.func @transform_5(%arg0: i32, %arg1: i32) -> (i32, i32) {
    %c0_i32 = arith.constant 0 : i32
    %c0_i32_0 = arith.constant 0 : i32
    %c0_i32_1 = arith.constant 0 : i32
    return %c0_i32, %c0_i32_0 : i32, i32
  }
  func.func @transform_6(%arg0: i32, %arg1: i32) -> (i32, i32) {
    %c0_i32 = arith.constant 0 : i32
    %c0_i32_0 = arith.constant 0 : i32
    %c0_i32_1 = arith.constant 0 : i32
    return %c0_i32, %c0_i32_0 : i32, i32
  }
  func.func @transform_7(%arg0: i32, %arg1: i32) -> (i32, i32) {
    %c0_i32 = arith.constant 0 : i32
    %c0_i32_0 = arith.constant 0 : i32
    return %arg0, %c0_i32 : i32, i32
  }
}

</mosaic_0001>

<llo_original>
// kernel: tpu_custom_call.1
$region0: #{tpu_custom_call.1}
  #allocation0 [shape = 'u32[]', space=smem, size = 0x4, offset = 0x4, fixed_abs, tag = 'smem constant byte address 0x4 - core index']
  #allocation1 [shape = 'u32[144,128]{1,0:T(1,128)}', space=vmem, size = 0x12000, scoped, tag = 'internal scratch']
  #allocation2 [shape = 'f32[1,8,128]{2,1,0:T(8,128)}', space=vmem, size = 0x1000, scoped, tag = 'scratch operand']
  %s0 = inlined_call_operand.vmem [shape: f32[1,8,256], index: 0, kind: input, shape index: {}]
  %s1 = inlined_call_operand.vmem [shape: f32[1,2], index: 1, kind: input, shape index: {}]
  %s2 = inlined_call_operand.vmem [shape: f32[2,64], index: 2, kind: input, shape index: {}]
  %s3 = inlined_call_operand.vmem [shape: f32[8,64], index: 3, kind: input, shape index: {}]
  %s4 = inlined_call_operand.vmem [shape: f32[1,64], index: 4, kind: input, shape index: {}]
  %s5 = inlined_call_operand.vmem [shape: f32[64,16], index: 5, kind: input, shape index: {}]
  %s6 = inlined_call_operand.vmem [shape: f32[1,16], index: 6, kind: input, shape index: {}]
  %s7 = inlined_call_operand.hbm [shape: f32[1,16], index: 7, kind: output, shape index: {}]
  %s8 = sld [smem:[#allocation0]]
  $region46: #{tpu_custom_call.1} parent=0
    _
  %s10 = ssub.s32 1, %s8
  %s11 = scalar_select 0, %s10, %s8
  $region1: #{tpu_custom_call.1} parent=0
    #allocation3 [shape = 'u8[512]{0}', space=vmem, size = 0x400, scoped, tag = 'output window, operand 0, single buffered']
    #allocation4 [shape = 's32[1]{0}', space=sflag, size = 0x4, scoped, tag = 'scoped memory for tpu_custom_call.1']
    %12 = vsyncpa [#allocation4], 0
    // Predicated region
    $region2: #{tpu_custom_call.1} parent=1 // pred_check
      _
    $region3: #{tpu_custom_call.1} parent=1 // pred_check_branch
      %14 = sbr.rel (0) target = $region5
    $region4: #{tpu_custom_call.1} parent=1 // pred_region
      _
    $region5: #{tpu_custom_call.1} parent=1 // pred_fallthru
      _
    // Predicated region
    $region6: #{tpu_custom_call.1} parent=1 // pred_check
      _
    $region7: #{tpu_custom_call.1} parent=1 // pred_check_branch
      %16 = sbr.rel (0) target = $region9
    $region8: #{tpu_custom_call.1} parent=1 // pred_region
      _
    $region9: #{tpu_custom_call.1} parent=1 // pred_fallthru
      _
    // Predicated region
    $region10: #{tpu_custom_call.1} parent=1 // pred_check
      _
    $region11: #{tpu_custom_call.1} parent=1 // pred_check_branch
      %18 = sbr.rel (0) target = $region13
    $region12: #{tpu_custom_call.1} parent=1 // pred_region
      _
    $region13: #{tpu_custom_call.1} parent=1 // pred_fallthru
      _
    // Predicated region
    $region14: #{tpu_custom_call.1} parent=1 // pred_check
      _
    $region15: #{tpu_custom_call.1} parent=1 // pred_check_branch
      %20 = sbr.rel (0) target = $region17
    $region16: #{tpu_custom_call.1} parent=1 // pred_region
      _
    $region17: #{tpu_custom_call.1} parent=1 // pred_fallthru
      _
    // Predicated region
    $region18: #{tpu_custom_call.1} parent=1 // pred_check
      _
    $region19: #{tpu_custom_call.1} parent=1 // pred_check_branch
      %22 = sbr.rel (0) target = $region21
    $region20: #{tpu_custom_call.1} parent=1 // pred_region
      _
    $region21: #{tpu_custom_call.1} parent=1 // pred_fallthru
      _
    // Predicated region
    $region22: #{tpu_custom_call.1} parent=1 // pred_check
      _
    $region23: #{tpu_custom_call.1} parent=1 // pred_check_branch
      %24 = sbr.rel (0) target = $region25
    $region24: #{tpu_custom_call.1} parent=1 // pred_region
      _
    $region25: #{tpu_custom_call.1} parent=1 // pred_fallthru
      _
    // Predicated region
    $region26: #{tpu_custom_call.1} parent=1 // pred_check
      _
    $region27: #{tpu_custom_call.1} parent=1 // pred_check_branch
      %26 = sbr.rel (0) target = $region29
    $region28: #{tpu_custom_call.1} parent=1 // pred_region
      _
    $region29: #{tpu_custom_call.1} parent=1 // pred_fallthru
      _
    %p27 = scmp.eq.s32.totalorder 0, 0
    // Predicated region
    $region30: #{tpu_custom_call.1} parent=1 // pred_check
      %p28 = pneg %p27
    $region31: #{tpu_custom_call.1} parent=1 // pred_check_branch
      %30 = sbr.rel (%p28) target = $region33
    $region32: #{tpu_custom_call.1} parent=1 // pred_region
      %31 = vst [vmem:[#allocation2] sm:$0xff] 0.0
    $region33: #{tpu_custom_call.1} parent=1 // pred_fallthru
      _
    %v32 = vld [vmem:[#allocation2] sm:$0xff]
    %v33 = vld [vmem:[%s0] sm:$0xff]
    %v34 = vadd.f32 %v32, %v33
    %35 = vst [vmem:[#allocation2] sm:$0xff] %v34
    %v36 = vld [vmem:[#allocation2] sm:$0xff]
    %s37 = scalar_lea.vmem %s0, 8
    %v38 = vld [vmem:[%s37] sm:$0xff]
    %v39 = vadd.f32 %v36, %v38
    %40 = vst [vmem:[#allocation2] sm:$0xff] %v39
    // Predicated region
    $region34: #{tpu_custom_call.1} parent=1 // pred_check
      %p41 = pneg %p27
    $region35: #{tpu_custom_call.1} parent=1 // pred_check_branch
      %43 = sbr.rel (%p41) target = $region37
    $region36: #{tpu_custom_call.1} parent=1 // pred_region
      %v44 = vld [vmem:[#allocation2] sm:$0xff]
      %45 = vadd.xlane.f32.xlu0 %v44
      %v46 = vpop.xlane.xlu0 %45
      %v47 = vld [vmem:[%s1] sm:$0x1]
      %v48 = vld [vmem:[%s2] sm:$0x3]
      %v49 = vld [vmem:[%s3] sm:$0xff]
      %v51 = vlaneseq
      %v52 = vand.u32 %v51, 127
      %v53 = vlaneseq
      %v54 = vshrl.u32 %v53, 7
      %v55 = vsub.s32 %v52, %v54
      %v56 = vrot.slane %v46, %v55
      %vm57 = vcmask 64512
      %v58 = vsel %vm57, %v56, 0
      %60 = vmatprep.subr.mxu0 0.0
      %61 = vmatpush1.msra.mxu0 %v49
      %62 = vmatprep.subr.mxu0 0.0
      %63 = vmatpush1.msra.mxu0 0.0
      %64 = vmatprep.subr.mxu0 0.0
      %65 = vmatpush1.msra.mxu0 0.0
      %66 = vmatprep.subr.mxu0 0.0
      %67 = vmatpush1.msra.mxu0 0.0
      %68 = vmatprep.subr.mxu0 0.0
      %69 = vmatpush1.msra.mxu0 0.0
      %70 = vmatprep.subr.mxu0 0.0
      %71 = vmatpush1.msra.mxu0 0.0
      %72 = vmatprep.subr.mxu0 0.0
      %73 = vmatpush1.msra.mxu0 0.0
      %74 = vmatprep.subr.mxu0 0.0
      %75 = vmatpush1.msra.mxu0 0.0
      %76 = vmatprep.subr.mxu0 0.0
      %77 = vmatpush1.msra.mxu0 0.0
      %78 = vmatprep.subr.mxu0 0.0
      %79 = vmatpush1.msra.mxu0 0.0
      %80 = vmatprep.subr.mxu0 0.0
      %81 = vmatpush1.msra.mxu0 0.0
      %82 = vmatprep.subr.mxu0 0.0
      %83 = vmatpush1.msra.mxu0 0.0
      %84 = vmatprep.subr.mxu0 0.0
      %85 = vmatpush1.msra.mxu0 0.0
      %86 = vmatprep.subr.mxu0 0.0
      %87 = vmatpush1.msra.mxu0 0.0
      %88 = vmatprep.subr.mxu0 0.0
      %89 = vmatpush1.msra.mxu0 0.0
      %90 = vmatprep.subr.mxu0 0.0
      %91 = vmatpush1.msra.mxu0 0.0
      %92 = vmatprep.subr.mxu0 0.0
      %93 = vmatpush1.msra.mxu0 0.0
      %94 = vmatprep.subr.mxu0 0.0
      %95 = vmatpush1.msra.mxu0 0.0
      %96 = vmatprep.subr.mxu0 0.0
      %97 = vmatpush1.msra.mxu0 0.0
      %98 = vmatprep.subr.mxu0 0.0
      %99 = vmatpush1.msra.mxu0 0.0
      %100 = vmatprep.subr.mxu0 0.0
      %101 = vmatpush1.msra.mxu0 0.0
      %102 = vmatprep.subr.mxu0 0.0
      %103 = vmatpush1.msra.mxu0 0.0
      %104 = vmatprep.subr.mxu0 0.0
      %105 = vmatpush1.msra.mxu0 0.0
      %106 = vmatprep.subr.mxu0 0.0
      %107 = vmatpush1.msra.mxu0 0.0
      %108 = vmatprep.subr.mxu0 0.0
      %109 = vmatpush1.msra.mxu0 0.0
      %110 = vmatprep.subr.mxu0 0.0
      %111 = vmatpush1.msra.mxu0 0.0
      %112 = vmatprep.subr.mxu0 0.0
      %113 = vmatpush1.msra.mxu0 0.0
      %114 = vmatprep.subr.mxu0 0.0
      %115 = vmatpush1.msra.mxu0 0.0
      %116 = vmatprep.subr.mxu0 0.0
      %117 = vmatpush1.msra.mxu0 0.0
      %118 = vmatprep.subr.mxu0 0.0
      %119 = vmatpush1.msra.mxu0 0.0
      %120 = vmatprep.subr.mxu0 0.0
      %121 = vmatpush1.msra.mxu0 0.0
      %122 = vmatprep.subr.mxu0 0.0
      %123 = vmatpush1.msra.mxu0 0.0
      %124 = vmatprep.mubr.f32.mxu0 0.0
      %125 = vmatmul.mubr.f32.gmra.mrb[0].mxu0 %v58
      %v126 = vpop.f32.mrb[0].mxu0
      %v127 = vadd.f32 0.0, %v126
      %v128 = vpop.f32.mrb[0].mxu0
      %129 = vdwg.mxu0
      %vm130 = vcmask 15360
      %v132 = vsel %vm130, %v47, 0
      %vm134 = vcmask 1041408
      %v136 = vsel %vm134, %v48, 0
      %138 = vmatprep.subr.mxu0 0.0
      %139 = vmatpush1.msra.mxu0 %v136
      %140 = vmatprep.subr.mxu0 0.0
      %141 = vmatpush1.msra.mxu0 0.0
      %142 = vmatprep.subr.mxu0 0.0
      %143 = vmatpush1.msra.mxu0 0.0
      %144 = vmatprep.subr.mxu0 0.0
      %145 = vmatpush1.msra.mxu0 0.0
      %146 = vmatprep.subr.mxu0 0.0
      %147 = vmatpush1.msra.mxu0 0.0
      %148 = vmatprep.subr.mxu0 0.0
      %149 = vmatpush1.msra.mxu0 0.0
      %150 = vmatprep.subr.mxu0 0.0
      %151 = vmatpush1.msra.mxu0 0.0
      %152 = vmatprep.subr.mxu0 0.0
      %153 = vmatpush1.msra.mxu0 0.0
      %154 = vmatprep.subr.mxu0 0.0
      %155 = vmatpush1.msra.mxu0 0.0
      %156 = vmatprep.subr.mxu0 0.0
      %157 = vmatpush1.msra.mxu0 0.0
      %158 = vmatprep.subr.mxu0 0.0
      %159 = vmatpush1.msra.mxu0 0.0
      %160 = vmatprep.subr.mxu0 0.0
      %161 = vmatpush1.msra.mxu0 0.0
      %162 = vmatprep.subr.mxu0 0.0
      %163 = vmatpush1.msra.mxu0 0.0
      %164 = vmatprep.subr.mxu0 0.0
      %165 = vmatpush1.msra.mxu0 0.0
      %166 = vmatprep.subr.mxu0 0.0
      %167 = vmatpush1.msra.mxu0 0.0
      %168 = vmatprep.subr.mxu0 0.0
      %169 = vmatpush1.msra.mxu0 0.0
      %170 = vmatprep.subr.mxu0 0.0
      %171 = vmatpush1.msra.mxu0 0.0
      %172 = vmatprep.subr.mxu0 0.0
      %173 = vmatpush1.msra.mxu0 0.0
      %174 = vmatprep.subr.mxu0 0.0
      %175 = vmatpush1.msra.mxu0 0.0
      %176 = vmatprep.subr.mxu0 0.0
      %177 = vmatpush1.msra.mxu0 0.0
      %178 = vmatprep.subr.mxu0 0.0
      %179 = vmatpush1.msra.mxu0 0.0
      %180 = vmatprep.subr.mxu0 0.0
      %181 = vmatpush1.msra.mxu0 0.0
      %182 = vmatprep.subr.mxu0 0.0
      %183 = vmatpush1.msra.mxu0 0.0
      %184 = vmatprep.subr.mxu0 0.0
      %185 = vmatpush1.msra.mxu0 0.0
      %186 = vmatprep.subr.mxu0 0.0
      %187 = vmatpush1.msra.mxu0 0.0
      %188 = vmatprep.subr.mxu0 0.0
      %189 = vmatpush1.msra.mxu0 0.0
      %190 = vmatprep.subr.mxu0 0.0
      %191 = vmatpush1.msra.mxu0 0.0
      %192 = vmatprep.subr.mxu0 0.0
      %193 = vmatpush1.msra.mxu0 0.0
      %194 = vmatprep.subr.mxu0 0.0
      %195 = vmatpush1.msra.mxu0 0.0
      %196 = vmatprep.subr.mxu0 0.0
      %197 = vmatpush1.msra.mxu0 0.0
      %198 = vmatprep.subr.mxu0 0.0
      %199 = vmatpush1.msra.mxu0 0.0
      %200 = vmatprep.subr.mxu0 0.0
      %201 = vmatpush1.msra.mxu0 0.0
      %202 = vmatprep.mubr.f32.mxu0 0.0
      %203 = vmatmul.mubr.f32.gmra.mrb[0].mxu0 %v132
      %v204 = vpop.f32.mrb[0].mxu0
      %v205 = vadd.f32 %v127, %v204
      %v206 = vpop.f32.mrb[0].mxu0
      %207 = vdwg.mxu0
      %v208 = vld [vmem:[%s4] sm:$0x1]
      %v209 = vadd.f32 %v205, %v208
      %v210 = vmax.f32 %v209, 0.0
      %v211 = vld [vmem:[%s5] sm:$0xff]
      %v212 = vld [vmem:[%s5 + $0x8] sm:$0xff]
      %v213 = vld [vmem:[%s5 + $0x10] sm:$0xff]
      %v214 = vld [vmem:[%s5 + $0x18] sm:$0xff]
      %v215 = vld [vmem:[%s5 + $0x20] sm:$0xff]
      %v216 = vld [vmem:[%s5 + $0x28] sm:$0xff]
      %v217 = vld [vmem:[%s5 + $0x30] sm:$0xff]
      %v218 = vld [vmem:[%s5 + $0x38] sm:$0xff]
      %v219 = vld [vmem:[%s6] sm:$0x1]
      %vm220 = vcmask 523264
      %v222 = vsel %vm220, %v210, 0
      %224 = vmatprep.subr.mxu0 0.0
      %225 = vmatpush1.msra.mxu0 %v211
      %226 = vmatprep.subr.mxu0 0.0
      %227 = vmatpush1.msra.mxu0 %v212
      %228 = vmatprep.subr.mxu0 0.0
      %229 = vmatpush1.msra.mxu0 %v213
      %230 = vmatprep.subr.mxu0 0.0
      %231 = vmatpush1.msra.mxu0 %v214
      %232 = vmatprep.subr.mxu0 0.0
      %233 = vmatpush1.msra.mxu0 %v215
      %234 = vmatprep.subr.mxu0 0.0
      %235 = vmatpush1.msra.mxu0 %v216
      %236 = vmatprep.subr.mxu0 0.0
      %237 = vmatpush1.msra.mxu0 %v217
      %238 = vmatprep.subr.mxu0 0.0
      %239 = vmatpush1.msra.mxu0 %v218
      %240 = vmatprep.subr.mxu0 0.0
      %241 = vmatpush1.msra.mxu0 0.0
      %242 = vmatprep.subr.mxu0 0.0
      %243 = vmatpush1.msra.mxu0 0.0
      %244 = vmatprep.subr.mxu0 0.0
      %245 = vmatpush1.msra.mxu0 0.0
      %246 = vmatprep.subr.mxu0 0.0
      %247 = vmatpush1.msra.mxu0 0.0
      %248 = vmatprep.subr.mxu0 0.0
      %249 = vmatpush1.msra.mxu0 0.0
      %250 = vmatprep.subr.mxu0 0.0
      %251 = vmatpush1.msra.mxu0 0.0
      %252 = vmatprep.subr.mxu0 0.0
      %253 = vmatpush1.msra.mxu0 0.0
      %254 = vmatprep.subr.mxu0 0.0
      %255 = vmatpush1.msra.mxu0 0.0
      %256 = vmatprep.subr.mxu0 0.0
      %257 = vmatpush1.msra.mxu0 0.0
      %258 = vmatprep.subr.mxu0 0.0
      %259 = vmatpush1.msra.mxu0 0.0
      %260 = vmatprep.subr.mxu0 0.0
      %261 = vmatpush1.msra.mxu0 0.0
      %262 = vmatprep.subr.mxu0 0.0
      %263 = vmatpush1.msra.mxu0 0.0
      %264 = vmatprep.subr.mxu0 0.0
      %265 = vmatpush1.msra.mxu0 0.0
      %266 = vmatprep.subr.mxu0 0.0
      %267 = vmatpush1.msra.mxu0 0.0
      %268 = vmatprep.subr.mxu0 0.0
      %269 = vmatpush1.msra.mxu0 0.0
      %270 = vmatprep.subr.mxu0 0.0
      %271 = vmatpush1.msra.mxu0 0.0
      %272 = vmatprep.subr.mxu0 0.0
      %273 = vmatpush1.msra.mxu0 0.0
      %274 = vmatprep.subr.mxu0 0.0
      %275 = vmatpush1.msra.mxu0 0.0
      %276 = vmatprep.subr.mxu0 0.0
      %277 = vmatpush1.msra.mxu0 0.0
      %278 = vmatprep.subr.mxu0 0.0
      %279 = vmatpush1.msra.mxu0 0.0
      %280 = vmatprep.subr.mxu0 0.0
      %281 = vmatpush1.msra.mxu0 0.0
      %282 = vmatprep.subr.mxu0 0.0
      %283 = vmatpush1.msra.mxu0 0.0
      %284 = vmatprep.subr.mxu0 0.0
      %285 = vmatpush1.msra.mxu0 0.0
      %286 = vmatprep.subr.mxu0 0.0
      %287 = vmatpush1.msra.mxu0 0.0
      %288 = vmatprep.mubr.f32.mxu0 0.0
      %289 = vmatmul.mubr.f32.gmra.mrb[0].mxu0 %v222
      %v290 = vpop.f32.mrb[0].mxu0
      %v291 = vadd.f32 %v219, %v290
      %v292 = vpop.f32.mrb[0].mxu0
      %293 = vdwg.mxu0
      %v294 = vxor.u32 %v291, 2147483648
      %v295 = vmul.f32 %v294, 1.442695
      %v296 = vpow.pop %v295
      %v297 = vadd.f32 %v296, 1.0
      %v298 = vrcp.pop %v297
      %v299 = vmul.f32 1.0, %v298
      %vm300 = vcmask 122880
      %301 = vst.msk [vmem:[#allocation3] sm:$0x1] %vm300, %v299
    $region37: #{tpu_custom_call.1} parent=1 // pred_fallthru
      _
    // Predicated region
    $region38: #{tpu_custom_call.1} parent=1 // pred_check
      _
    $region39: #{tpu_custom_call.1} parent=1 // pred_check_branch
      %303 = sbr.rel (0) target = $region41
    $region40: #{tpu_custom_call.1} parent=1 // pred_region
      %s305 = ssub.s32 16, 16
      %306 = vsyncadd [#allocation4], %s305
      %s308 = sshll.u32 [#allocation3], 4
      %s309 = int_to_ptr.vmem [resolvable:$true] %s308
      %311 = dma.vmem_to_hbm [thread:$0]  %s309, 16, %s7, [#allocation4]
    $region41: #{tpu_custom_call.1} parent=1 // pred_fallthru
      _
    // Predicated region
    $region42: #{tpu_custom_call.1} parent=1 // pred_check
      _
    $region43: #{tpu_custom_call.1} parent=1 // pred_check_branch
      %313 = sbr.rel (0) target = $region45
    $region44: #{tpu_custom_call.1} parent=1 // pred_region
      %314 = dma.done [#allocation4], 16
    $region45: #{tpu_custom_call.1} parent=1 // pred_fallthru
      _
    %315 = vsyncpa [#allocation4], 1

</llo_original>
